<compile_context>
chip_gen: v7x
topology: tpu7x:2x2x1
jax: 0.10.0
libtpu: 0.0.40
codegen_flags: <defaults>
</compile_context>

<pallas_src>
import jax
import jax.numpy as jnp
from jax.experimental import pallas as pl
from jax.experimental.pallas import tpu as pltpu

THRESHOLD = 0.3


def splade_kernel(hidden_ref, mask_ref, w_ref, b_ref, act_ref, rep_ref):
    # hidden_ref: (B, ts, H) bf16    mask_ref: (B, ts, 1) f32
    # w_ref:      (H, tv)    bf16    b_ref:    (1, tv)    f32
    # act_ref:    (B, ts, tv) bf16   rep_ref:  (B, 1, tv) f32 (resident over seq)
    r = pl.program_id(1)
    n_r = pl.num_programs(1)
    B, ts, H = hidden_ref.shape
    tv = w_ref.shape[1]

    @pl.when(r == 0)
    def _init():
        rep_ref[...] = jnp.zeros_like(rep_ref)

    # One large 2-D MXU matmul: (B*ts, H)bf16 x (H, tv)bf16 -> f32 accumulate.
    hidden2d = hidden_ref[...].reshape(B * ts, H)
    logits = jnp.dot(hidden2d, w_ref[...], preferred_element_type=jnp.float32)
    logits = logits + b_ref[...]

    # forward(): log1p(relu(logits)); stored bf16 (dominant HBM write stream).
    activated = jnp.log1p(jnp.maximum(logits, 0.0)).reshape(B, ts, tv)
    act_ref[...] = activated.astype(act_ref.dtype)

    # encode_batch(): masked max-pool over the sequence axis, f32 reduction.
    # activated >= 0 and THRESHOLD > 0 => mask-multiply == -inf select.
    masked = activated * mask_ref[...]
    partial = jnp.max(masked, axis=1)[:, None, :]            # (B, 1, tv)
    rep_ref[...] = jnp.maximum(rep_ref[...], partial)

    @pl.when(r == n_r - 1)
    def _finalize():
        reps = rep_ref[...]
        rep_ref[...] = reps * (reps > THRESHOLD).astype(reps.dtype)


def _round_up(x, m):
    return (x + m - 1) // m * m


def _vmem_capacity_bytes():
    try:
        return int(pltpu.get_tpu_info().vmem_capacity_bytes)
    except Exception:
        pass
    try:
        kind = jax.devices()[0].device_kind.lower()
        if "v7" in kind:
            return 64 * 1024 * 1024
    except Exception:
        pass
    return 128 * 1024 * 1024


def _vmem_estimate_bytes(B, ts, H, tv):
    """Honest per-step VMEM estimate: double-buffered streams + f32 temporaries."""
    bf16, f32 = 2, 4
    dbl = 2                                  # default double-buffering per stream
    hidden = dbl * B * ts * H * bf16
    mask = dbl * B * ts * 1 * f32
    w = dbl * H * tv * bf16
    bias = dbl * tv * f32
    act_out = dbl * B * ts * tv * bf16
    rep_out = dbl * B * tv * f32
    interm = 2 * B * ts * tv * f32           # f32 logits + activated/masked temps
    return hidden + mask + w + bias + act_out + rep_out + interm


def splade_encode(hidden, attention_mask, w_vocab, b_vocab, *, tv=None, ts=None):
    B, S, H = hidden.shape
    V = w_vocab.shape[1]

    # Generation-aware VMEM budgeting (v5e/v6e: 128 MiB physical, v7x: 64 MiB).
    vmem_cap = _vmem_capacity_bytes()
    if vmem_cap >= 100 * 1024 * 1024:
        vmem_limit = 100 * 1024 * 1024
        budget = 88 * 1024 * 1024
        tv_default = 2048
    else:
        vmem_limit = 52 * 1024 * 1024        # leave headroom on v7x (64 MiB/TC)
        budget = 40 * 1024 * 1024
        tv_default = 512

    tv_req = tv_default if tv is None else tv
    tv = max(128, (min(tv_req, _round_up(V, 128)) // 128) * 128)

    # MXU M-floor: 2x256^2 on v6e/v7x (128 would do on v5e); don't exceed B*S.
    m_floor = min(256, B * S)

    if ts is None:
        ts = S
        # Shrink ts toward the M floor first, then tv, until the tile set fits.
        while _vmem_estimate_bytes(B, ts, H, tv) > budget:
            half = ts // 2
            if (half >= 16 and half % 16 == 0 and S % half == 0
                    and B * half >= m_floor):
                ts = half
            elif tv > 256:
                tv //= 2
            else:
                break

    assert S % ts == 0, "sequence tile must evenly divide S"
    assert ts == S or ts % 16 == 0, (
        "streamed seq tiles must be a multiple of 16 (bf16 sublane packing)")
    n_seq_tiles = S // ts

    # Pad the vocab axis to a multiple of the lane-aligned tv (real SPLADE vocab
    # 30522 is not 128-aligned).  Zero-padded W/b columns produce
    # activated = log1p(relu(0)) = 0 < THRESHOLD and are sliced off below.
    V_pad = _round_up(V, tv)
    if V_pad != V:
        w_vocab = jnp.pad(w_vocab, ((0, 0), (0, V_pad - V)))
        b_vocab = jnp.pad(b_vocab, (0, V_pad - V))
    n_vocab_tiles = V_pad // tv

    # bf16 MXU operands (accepted accuracy tradeoff); f32 accumulation in-kernel.
    hidden_bf = hidden.astype(jnp.bfloat16)
    w_bf = w_vocab.astype(jnp.bfloat16)
    mask3 = attention_mask.astype(jnp.float32).reshape(B, S, 1)
    b2 = b_vocab.astype(jnp.float32).reshape(1, V_pad)

    hidden_reads = 1 if n_seq_tiles == 1 else n_vocab_tiles
    cost = pl.CostEstimate(
        flops=2 * B * S * H * V_pad,
        transcendentals=B * S * V_pad,                       # log1p
        bytes_accessed=(hidden_reads * (B * S * H * 2 + B * S * 4)
                        + H * V_pad * 2 + V_pad * 4
                        + B * S * V_pad * 2 + B * V_pad * 4),
    )

    grid_spec = pltpu.PrefetchScalarGridSpec(
        num_scalar_prefetch=0,
        grid=(n_vocab_tiles, n_seq_tiles),   # (vocab parallel, seq reduction)
        in_specs=[
            pl.BlockSpec((B, ts, H), lambda j, r: (0, r, 0)),
            pl.BlockSpec((B, ts, 1), lambda j, r: (0, r, 0)),
            pl.BlockSpec((H, tv), lambda j, r: (0, j)),
            pl.BlockSpec((1, tv), lambda j, r: (0, j)),
        ],
        out_specs=[
            pl.BlockSpec((B, ts, tv), lambda j, r: (0, r, j)),
            pl.BlockSpec((B, 1, tv), lambda j, r: (0, 0, j)),
        ],
    )

    activated, reps3 = pl.pallas_call(
        splade_kernel,
        out_shape=[
            jax.ShapeDtypeStruct((B, S, V_pad), jnp.bfloat16),
            jax.ShapeDtypeStruct((B, 1, V_pad), jnp.float32),
        ],
        grid_spec=grid_spec,
        compiler_params=pltpu.CompilerParams(
            # TODO(synk): on v7x, pltpu.CORE_PARALLEL on the vocab axis would
            # shard the disjoint vocab tiles across the 2 TensorCores.
            dimension_semantics=("parallel", "arbitrary"),
            vmem_limit_bytes=vmem_limit,
        ),
        cost_estimate=cost,
    )(hidden_bf, mask3, w_bf, b2)

    # Slice off padded vocab columns.
    return activated[:, :, :V], reps3.reshape(B, V_pad)[:, :V]


def reference(hidden, attention_mask, w_vocab, b_vocab):
    logits = jnp.einsum("bsh,hv->bsv", hidden, w_vocab) + b_vocab
    act = jnp.log1p(jax.nn.relu(logits))
    masked = jnp.where(attention_mask[..., None] > 0, act, -jnp.inf)
    reps = masked.max(axis=1)
    reps = jnp.where(reps > THRESHOLD, reps, jnp.zeros_like(reps))
    return act, reps


if __name__ == "__main__":
    # Small shapes; V deliberately not 128-aligned to exercise vocab padding.
    B, S, H, V = 2, 32, 32, 500

    key = jax.random.PRNGKey(0)
    k_emb, k_ids, k_w, k_b = jax.random.split(key, 4)

    # Deterministic synthetic parameters (synthetic MLM backbone + vocab head).
    emb_table = jax.random.normal(k_emb, (V, H), dtype=jnp.float32) * 0.5
    w_vocab = jax.random.normal(k_w, (H, V), dtype=jnp.float32) * 0.2
    b_vocab = jax.random.normal(k_b, (V,), dtype=jnp.float32) * 0.1

    # Synthetic tokenized batch: input_ids + attention_mask with padding.
    input_ids = jax.random.randint(k_ids, (B, S), 0, V)
    lengths = jnp.array([S, 13], dtype=jnp.int32)
    attention_mask = (jnp.arange(S)[None, :] < lengths[:, None]).astype(jnp.int32)

    # Embedding lookup (MaskedLM backbone stand-in) is plain-JAX glue (gather).
    hidden = emb_table[input_ids]                                  # (B, S, H)

    # Reference mirrors the kernel's accepted bf16-operand tradeoff (f32 math on
    # bf16-rounded hidden/W), so the threshold decision is compared like-for-like.
    hidden_bfr = hidden.astype(jnp.bfloat16).astype(jnp.float32)
    w_bfr = w_vocab.astype(jnp.bfloat16).astype(jnp.float32)
    act_ref, reps_ref = reference(hidden_bfr, attention_mask, w_bfr, b_vocab)

    # Exercise both the resident-hidden single-seq-tile path and the
    # multi-tile vocab x seq-reduction (accumulator) path.
    for kw in ({}, dict(tv=128, ts=16)):
        activated, doc_reps = splade_encode(
            hidden, attention_mask, w_vocab, b_vocab, **kw)
        jax.block_until_ready((activated, doc_reps))
        # activated is stored bf16 -> compare at bf16 precision.
        assert jnp.allclose(activated.astype(jnp.float32), act_ref,
                            rtol=2e-2, atol=2e-2), kw
        # doc_reps stays on the f32 path -> tight tolerance.
        assert jnp.allclose(doc_reps, reps_ref, rtol=1e-3, atol=1e-3), kw
        assert activated.shape == (B, S, V) and doc_reps.shape == (B, V), kw

    # TODO(synk): the per-doc sparse `indices`/`values` extraction (torch.nonzero)
    # produces dynamic shapes and has no Pallas/jit equivalent; consume the dense
    # thresholded doc_reps on the host instead.

    print("KERNEL_OK")
</pallas_src>

<mosaic_0001>
module attributes {stable_mosaic.version = 11 : i64} {
  func.func @splade_kernel(%arg0: i32, %arg1: i32, %arg2: memref<2x32x32xbf16, #tpu.memory_space<vmem>>, %arg3: memref<2x32x1xf32, #tpu.memory_space<vmem>>, %arg4: memref<32x512xbf16, #tpu.memory_space<vmem>>, %arg5: memref<1x512xf32, #tpu.memory_space<vmem>>, %arg6: memref<2x32x512xbf16, #tpu.memory_space<vmem>>, %arg7: memref<2x1x512xf32, #tpu.memory_space<vmem>>) attributes {dimension_semantics = [#tpu.dimension_semantics<parallel>, #tpu.dimension_semantics<arbitrary>], iteration_bounds = array<i64: 1, 1>, scalar_prefetch = 0 : i64, scratch_operands = 0 : i64, tpu.core_type = #tpu.core_type<tc>, window_params = [{transform_indices = @transform_0, window_bounds = array<i64: 2, 32, 32>}, {transform_indices = @transform_1, window_bounds = array<i64: 2, 32, 1>}, {transform_indices = @transform_2, window_bounds = array<i64: 32, 512>}, {transform_indices = @transform_3, window_bounds = array<i64: 1, 512>}, {transform_indices = @transform_4, window_bounds = array<i64: 2, 32, 512>}, {transform_indices = @transform_5, window_bounds = array<i64: 2, 1, 512>}]} {
    %c0_i32 = arith.constant 0 : i32
    %0 = arith.cmpi eq, %arg1, %c0_i32 : i32
    %1 = arith.extui %0 : i1 to i32
    %c0_i32_0 = arith.constant 0 : i32
    %2 = arith.cmpi ne, %1, %c0_i32_0 : i32
    scf.if %2 {
      %cst_23 = arith.constant 0.000000e+00 : f32
      %27 = vector.broadcast %cst_23 : f32 to vector<2x1x512xf32>
      %c0_24 = arith.constant 0 : index
      %c0_25 = arith.constant 0 : index
      %c0_26 = arith.constant 0 : index
      %28 = vector.load %arg7[%c0_24, %c0_25, %c0_26] : memref<2x1x512xf32, #tpu.memory_space<vmem>>, vector<2x1x512xf32>
      tpu.vector_store %arg7[%c0_24, %c0_25, %c0_26], %27 {strides = array<i32>} : memref<2x1x512xf32, #tpu.memory_space<vmem>>, vector<2x1x512xf32>,
    } else {
    }
    %c0 = arith.constant 0 : index
    %c0_1 = arith.constant 0 : index
    %c0_2 = arith.constant 0 : index
    %3 = vector.load %arg2[%c0, %c0_1, %c0_2] : memref<2x32x32xbf16, #tpu.memory_space<vmem>>, vector<2x32x32xbf16>
    %4 = vector.shape_cast %3 : vector<2x32x32xbf16> to vector<64x32xbf16>
    %c0_3 = arith.constant 0 : index
    %c0_4 = arith.constant 0 : index
    %5 = vector.load %arg4[%c0_3, %c0_4] : memref<32x512xbf16, #tpu.memory_space<vmem>>, vector<32x512xbf16>
    %cst = arith.constant dense<0.000000e+00> : vector<64x512xf32>
    %6 = tpu.matmul %4, %5, %cst {dimension_numbers = #tpu.dot_dimension_numbers<[1], [0], [0], [1], [0, 0, 1, 1], [], []>} : vector<64x32xbf16>, vector<32x512xbf16>, vector<64x512xf32> -> vector<64x512xf32>
    %c0_5 = arith.constant 0 : index
    %c0_6 = arith.constant 0 : index
    %7 = vector.load %arg5[%c0_5, %c0_6] : memref<1x512xf32, #tpu.memory_space<vmem>>, vector<1x512xf32>
    %8 = vector.broadcast %7 : vector<1x512xf32> to vector<64x512xf32>
    %9 = arith.addf %6, %8 : vector<64x512xf32>
    %cst_7 = arith.constant 0.000000e+00 : f32
    %10 = vector.broadcast %cst_7 : f32 to vector<64x512xf32>
    %11 = arith.maximumf %9, %10 : vector<64x512xf32>
    %12 = math.log1p %11 : vector<64x512xf32>
    %13 = vector.shape_cast %12 : vector<64x512xf32> to vector<2x32x512xf32>
    %14 = arith.truncf %13 : vector<2x32x512xf32> to vector<2x32x512xbf16>
    %c0_8 = arith.constant 0 : index
    %c0_9 = arith.constant 0 : index
    %c0_10 = arith.constant 0 : index
    %15 = vector.load %arg6[%c0_8, %c0_9, %c0_10] : memref<2x32x512xbf16, #tpu.memory_space<vmem>>, vector<2x32x512xbf16>
    tpu.vector_store %arg6[%c0_8, %c0_9, %c0_10], %14 {strides = array<i32>} : memref<2x32x512xbf16, #tpu.memory_space<vmem>>, vector<2x32x512xbf16>,
    %c0_11 = arith.constant 0 : index
    %c0_12 = arith.constant 0 : index
    %c0_13 = arith.constant 0 : index
    %16 = vector.load %arg3[%c0_11, %c0_12, %c0_13] : memref<2x32x1xf32, #tpu.memory_space<vmem>>, vector<2x32x1xf32>
    %17 = vector.broadcast %16 : vector<2x32x1xf32> to vector<2x32x512xf32>
    %18 = arith.mulf %13, %17 : vector<2x32x512xf32>
    %cst_14 = arith.constant dense<0xFF800000> : vector<2x512xf32>
    %19 = vector.multi_reduction <maximumf>, %18, %cst_14 [1] : vector<2x32x512xf32> to vector<2x512xf32>
    %20 = vector.shape_cast %19 : vector<2x512xf32> to vector<2x1x512xf32>
    %c0_15 = arith.constant 0 : index
    %c0_16 = arith.constant 0 : index
    %c0_17 = arith.constant 0 : index
    %21 = vector.load %arg7[%c0_15, %c0_16, %c0_17] : memref<2x1x512xf32, #tpu.memory_space<vmem>>, vector<2x1x512xf32>
    %22 = arith.maximumf %21, %20 : vector<2x1x512xf32>
    %c0_18 = arith.constant 0 : index
    %c0_19 = arith.constant 0 : index
    %c0_20 = arith.constant 0 : index
    %23 = vector.load %arg7[%c0_18, %c0_19, %c0_20] : memref<2x1x512xf32, #tpu.memory_space<vmem>>, vector<2x1x512xf32>
    tpu.vector_store %arg7[%c0_18, %c0_19, %c0_20], %22 {strides = array<i32>} : memref<2x1x512xf32, #tpu.memory_space<vmem>>, vector<2x1x512xf32>,
    %c0_i32_21 = arith.constant 0 : i32
    %24 = arith.cmpi eq, %arg1, %c0_i32_21 : i32
    %25 = arith.extui %24 : i1 to i32
    %c0_i32_22 = arith.constant 0 : i32
    %26 = arith.cmpi ne, %25, %c0_i32_22 : i32
    scf.if %26 {
      %c0_23 = arith.constant 0 : index
      %c0_24 = arith.constant 0 : index
      %c0_25 = arith.constant 0 : index
      %27 = vector.load %arg7[%c0_23, %c0_24, %c0_25] : memref<2x1x512xf32, #tpu.memory_space<vmem>>, vector<2x1x512xf32>
      %cst_26 = arith.constant 3.000000e-01 : f32
      %28 = vector.broadcast %cst_26 : f32 to vector<2x1x512xf32>
      %29 = arith.cmpf ogt, %27, %28 : vector<2x1x512xf32>
      %30 = arith.extui %29 : vector<2x1x512xi1> to vector<2x1x512xi32>
      %31 = arith.sitofp %30 : vector<2x1x512xi32> to vector<2x1x512xf32>
      %32 = arith.mulf %27, %31 : vector<2x1x512xf32>
      %c0_27 = arith.constant 0 : index
      %c0_28 = arith.constant 0 : index
      %c0_29 = arith.constant 0 : index
      %33 = vector.load %arg7[%c0_27, %c0_28, %c0_29] : memref<2x1x512xf32, #tpu.memory_space<vmem>>, vector<2x1x512xf32>
      tpu.vector_store %arg7[%c0_27, %c0_28, %c0_29], %32 {strides = array<i32>} : memref<2x1x512xf32, #tpu.memory_space<vmem>>, vector<2x1x512xf32>,
    } else {
    }
    return
  }
  func.func @transform_0(%arg0: i32, %arg1: i32) -> (i32, i32, i32) {
    %c0_i32 = arith.constant 0 : i32
    %c0_i32_0 = arith.constant 0 : i32
    %c0_i32_1 = arith.constant 0 : i32
    return %c0_i32, %arg1, %c0_i32_0 : i32, i32, i32
  }
  func.func @transform_1(%arg0: i32, %arg1: i32) -> (i32, i32, i32) {
    %c0_i32 = arith.constant 0 : i32
    %c0_i32_0 = arith.constant 0 : i32
    %c0_i32_1 = arith.constant 0 : i32
    return %c0_i32, %arg1, %c0_i32_0 : i32, i32, i32
  }
  func.func @transform_2(%arg0: i32, %arg1: i32) -> (i32, i32) {
    %c0_i32 = arith.constant 0 : i32
    %c0_i32_0 = arith.constant 0 : i32
    return %c0_i32, %arg0 : i32, i32
  }
  func.func @transform_3(%arg0: i32, %arg1: i32) -> (i32, i32) {
    %c0_i32 = arith.constant 0 : i32
    %c0_i32_0 = arith.constant 0 : i32
    return %c0_i32, %arg0 : i32, i32
  }
  func.func @transform_4(%arg0: i32, %arg1: i32) -> (i32, i32, i32) {
    %c0_i32 = arith.constant 0 : i32
    %c0_i32_0 = arith.constant 0 : i32
    return %c0_i32, %arg1, %arg0 : i32, i32, i32
  }
  func.func @transform_5(%arg0: i32, %arg1: i32) -> (i32, i32, i32) {
    %c0_i32 = arith.constant 0 : i32
    %c0_i32_0 = arith.constant 0 : i32
    %c0_i32_1 = arith.constant 0 : i32
    return %c0_i32, %c0_i32_0, %arg0 : i32, i32, i32
  }
}

</mosaic_0001>

<llo_original>
// kernel: tpu_custom_call.1
$region0: #{tpu_custom_call.1}
  #allocation0 [shape = 'u32[]', space=smem, size = 0x4, offset = 0x4, fixed_abs, tag = 'smem constant byte address 0x4 - core index']
  #allocation1 [shape = 'u32[144,128]{1,0:T(1,128)}', space=vmem, size = 0x12000, scoped, tag = 'internal scratch']
  %s0 = inlined_call_operand.hbm [shape: bf16[2,32,32], index: 0, kind: input, shape index: {}]
  %s1 = inlined_call_operand.hbm [shape: f32[2,32,1], index: 1, kind: input, shape index: {}]
  %s2 = inlined_call_operand.hbm [shape: bf16[32,512], index: 2, kind: input, shape index: {}]
  %s3 = inlined_call_operand.hbm [shape: f32[1,512], index: 3, kind: input, shape index: {}]
  %s4 = inlined_call_operand.hbm [shape: bf16[2,32,512], index: 4, kind: output, shape index: {0}]
  %s5 = inlined_call_operand.hbm [shape: f32[2,1,512], index: 5, kind: output, shape index: {1}]
  %6 = xla_tuple %s4, %s5
  %s7 = sld [smem:[#allocation0]]
  $region58: #{tpu_custom_call.1} parent=0
    _
  %s9 = ssub.s32 1, %s7
  %s10 = scalar_select 0, %s9, %s7
  $region1: #{tpu_custom_call.1} parent=0
    #allocation2 [shape = 'u8[16384]{0}', space=vmem, size = 0x4000, scoped, tag = 'input window, operand 0, single buffered']
    #allocation3 [shape = 's32[1]{0}', space=sflag, size = 0x4, scoped, tag = 'scoped memory for tpu_custom_call.1']
    #allocation4 [shape = 's32[1]{0}', space=sflag, size = 0x4, scoped, tag = 'scoped memory for tpu_custom_call.1']
    #allocation5 [shape = 'u8[32768]{0}', space=vmem, size = 0x8000, scoped, tag = 'input window, operand 1, single buffered']
    #allocation6 [shape = 's32[1]{0}', space=sflag, size = 0x4, scoped, tag = 'scoped memory for tpu_custom_call.1']
    #allocation7 [shape = 'u8[32768]{0}', space=vmem, size = 0x8000, scoped, tag = 'input window, operand 2, single buffered']
    #allocation8 [shape = 'u8[2048]{0}', space=vmem, size = 0x800, scoped, tag = 'input window, operand 3, single buffered']
    #allocation9 [shape = 's32[1]{0}', space=sflag, size = 0x4, scoped, tag = 'scoped memory for tpu_custom_call.1']
    #allocation10 [shape = 'u8[65536]{0}', space=vmem, size = 0x10000, scoped, tag = 'output window, operand 0, single buffered']
    #allocation11 [shape = 'u8[4096]{0}', space=vmem, size = 0x1000, scoped, tag = 'output window, operand 1, single buffered']
    #allocation12 [shape = 's32[1]{0}', space=sflag, size = 0x4, scoped, tag = 'scoped memory for tpu_custom_call.1']
    %11 = vsyncpa [#allocation3], 0
    %12 = vsyncpa [#allocation6], 0
    %13 = vsyncpa [#allocation9], 0
    %14 = vsyncpa [#allocation4], 0
    %15 = vsyncpa [#allocation12], 0
    // Predicated region
    $region2: #{tpu_custom_call.1} parent=1 // pred_check
      _
    $region3: #{tpu_custom_call.1} parent=1 // pred_check_branch
      %17 = sbr.rel (0) target = $region5
    $region4: #{tpu_custom_call.1} parent=1 // pred_region
      %s19 = ssub.s32 512, 512
      %20 = vsyncadd [#allocation3], %s19
      %s21 = sshll.u32 [#allocation2], 4
      %s22 = int_to_ptr.vmem [resolvable:$true] %s21
      %27 = dma.hbm_to_vmem [thread:$0]  %s0, 512, %s22, [#allocation3], 64, 64, 4
    $region5: #{tpu_custom_call.1} parent=1 // pred_fallthru
      _
    // Predicated region
    $region6: #{tpu_custom_call.1} parent=1 // pred_check
      _
    $region7: #{tpu_custom_call.1} parent=1 // pred_check_branch
      %29 = sbr.rel (0) target = $region9
    $region8: #{tpu_custom_call.1} parent=1 // pred_region
      %s31 = ssub.s32 1024, 1024
      %32 = vsyncadd [#allocation6], %s31
      %s33 = sshll.u32 [#allocation5], 4
      %s34 = int_to_ptr.vmem [resolvable:$true] %s33
      %39 = dma.hbm_to_vmem [thread:$0]  %s1, 1024, %s34, [#allocation6], 128, 128, 8
    $region9: #{tpu_custom_call.1} parent=1 // pred_fallthru
      _
    // Predicated region
    $region10: #{tpu_custom_call.1} parent=1 // pred_check
      _
    $region11: #{tpu_custom_call.1} parent=1 // pred_check_branch
      %41 = sbr.rel (0) target = $region13
    $region12: #{tpu_custom_call.1} parent=1 // pred_region
      %s43 = ssub.s32 1024, 1024
      %44 = vsyncadd [#allocation6], %s43
      %s45 = sshll.u32 [#allocation7], 4
      %s46 = int_to_ptr.vmem [resolvable:$true] %s45
      %51 = dma.hbm_to_vmem [thread:$0]  %s2, 1024, %s46, [#allocation6], 256, 256, 16
    $region13: #{tpu_custom_call.1} parent=1 // pred_fallthru
      _
    // Predicated region
    $region14: #{tpu_custom_call.1} parent=1 // pred_check
      _
    $region15: #{tpu_custom_call.1} parent=1 // pred_check_branch
      %53 = sbr.rel (0) target = $region17
    $region16: #{tpu_custom_call.1} parent=1 // pred_region
      %s55 = ssub.s32 64, 64
      %56 = vsyncadd [#allocation9], %s55
      %s58 = sshll.u32 [#allocation8], 4
      %s59 = int_to_ptr.vmem [resolvable:$true] %s58
      %61 = dma.hbm_to_vmem [thread:$0]  %s3, 64, %s59, [#allocation9]
    $region17: #{tpu_custom_call.1} parent=1 // pred_fallthru
      _
    // Predicated region
    $region18: #{tpu_custom_call.1} parent=1 // pred_check
      _
    $region19: #{tpu_custom_call.1} parent=1 // pred_check_branch
      %63 = sbr.rel (0) target = $region21
    $region20: #{tpu_custom_call.1} parent=1 // pred_region
      %64 = dma.done [#allocation3], 512
    $region21: #{tpu_custom_call.1} parent=1 // pred_fallthru
      _
    // Predicated region
    $region22: #{tpu_custom_call.1} parent=1 // pred_check
      _
    $region23: #{tpu_custom_call.1} parent=1 // pred_check_branch
      %66 = sbr.rel (0) target = $region25
    $region24: #{tpu_custom_call.1} parent=1 // pred_region
      %67 = dma.done [#allocation6], 1024
    $region25: #{tpu_custom_call.1} parent=1 // pred_fallthru
      _
    // Predicated region
    $region26: #{tpu_custom_call.1} parent=1 // pred_check
      _
    $region27: #{tpu_custom_call.1} parent=1 // pred_check_branch
      %69 = sbr.rel (0) target = $region29
    $region28: #{tpu_custom_call.1} parent=1 // pred_region
      %70 = dma.done [#allocation6], 1024
    $region29: #{tpu_custom_call.1} parent=1 // pred_fallthru
      _
    // Predicated region
    $region30: #{tpu_custom_call.1} parent=1 // pred_check
      _
    $region31: #{tpu_custom_call.1} parent=1 // pred_check_branch
      %72 = sbr.rel (0) target = $region33
    $region32: #{tpu_custom_call.1} parent=1 // pred_region
      %73 = dma.done [#allocation9], 64
    $region33: #{tpu_custom_call.1} parent=1 // pred_fallthru
      _
    %p75 = scmp.eq.s32.totalorder 0, 0
    // Predicated region
    $region34: #{tpu_custom_call.1} parent=1 // pred_check
      %p76 = pneg %p75
    $region35: #{tpu_custom_call.1} parent=1 // pred_check_branch
      %78 = sbr.rel (%p76) target = $region37
    $region36: #{tpu_custom_call.1} parent=1 // pred_region
      %v79 = vlaneseq
      %vm80 = vcmp.ge.s32.totalorder %v79, 0
      %vm81 = vcmp.lt.s32.totalorder %v79, 512
      %vm82 = vmand %vm80, %vm81
      %83 = vst.msk [vmem:[#allocation11] sm:$0xf] %vm82, 0.0
      %84 = vst.msk [vmem:[#allocation11 + $0x4] sm:$0xf] %vm82, 0.0
    $region37: #{tpu_custom_call.1} parent=1 // pred_fallthru
      _
    %v85 = vld [vmem:[#allocation2] sm:$0xf]
    %v86 = vld [vmem:[#allocation2 + $0x4] sm:$0xf]
    %v87 = vld [vmem:[#allocation2 + $0x8] sm:$0xf]
    %v88 = vld [vmem:[#allocation2 + $0xc] sm:$0xf]
    %v89 = vld [vmem:[#allocation2 + $0x10] sm:$0xf]
    %v90 = vld [vmem:[#allocation2 + $0x14] sm:$0xf]
    %v91 = vld [vmem:[#allocation2 + $0x18] sm:$0xf]
    %v92 = vld [vmem:[#allocation2 + $0x1c] sm:$0xf]
    %v93 = vld [vmem:[#allocation7] sm:$0xff]
    %v94 = vld [vmem:[#allocation7 + $0x8] sm:$0xff]
    %v95 = vld [vmem:[#allocation7 + $0x10] sm:$0xff]
    %v96 = vld [vmem:[#allocation7 + $0x18] sm:$0xff]
    %v97 = vld [vmem:[#allocation7 + $0x20] sm:$0xff]
    %v98 = vld [vmem:[#allocation7 + $0x28] sm:$0xff]
    %v99 = vld [vmem:[#allocation7 + $0x30] sm:$0xff]
    %v100 = vld [vmem:[#allocation7 + $0x38] sm:$0xff]
    %v101 = vld [vmem:[#allocation8] sm:$0xf]
    %v103 = vlaneseq
    %v104 = vshrl.u32 %v103, 7
    %v105 = vsub.s32 0, %v104
    %v106 = vrot.slane %v101, %v105
    %v107 = vlaneseq
    %v108 = vshrl.u32 %v107, 7
    %v109 = vsub.s32 1, %v108
    %v110 = vrot.slane %v101, %v109
    %v111 = vlaneseq
    %v112 = vshrl.u32 %v111, 7
    %v113 = vsub.s32 2, %v112
    %v114 = vrot.slane %v101, %v113
    %v115 = vlaneseq
    %v116 = vshrl.u32 %v115, 7
    %v117 = vsub.s32 3, %v116
    %v118 = vrot.slane %v101, %v117
    %v131 = vunpack.c.l.b16 %v85
    %v132 = vunpack.c.l.b16 %v86
    %v133 = vunpack.c.l.b16 %v87
    %v134 = vunpack.c.l.b16 %v88
    %v135 = vunpack.c.l.b16 %v89
    %v136 = vunpack.c.l.b16 %v90
    %v137 = vunpack.c.l.b16 %v91
    %v138 = vunpack.c.l.b16 %v92
    %v139 = vpack.c.b16 %v132, %v131
    %v140 = vpack.c.b16 %v134, %v133
    %v141 = vpack.c.b16 %v136, %v135
    %v142 = vpack.c.b16 %v138, %v137
    %v151 = vunpack.c.l.b16 %v93
    %v152 = vunpack.c.h.b16 %v93
    %v153 = vunpack.c.l.b16 %v94
    %v154 = vunpack.c.h.b16 %v94
    %v155 = vunpack.c.l.b16 %v95
    %v156 = vunpack.c.h.b16 %v95
    %v157 = vunpack.c.l.b16 %v96
    %v158 = vunpack.c.h.b16 %v96
    %v159 = vunpack.c.l.b16 %v97
    %v160 = vunpack.c.h.b16 %v97
    %v161 = vunpack.c.l.b16 %v98
    %v162 = vunpack.c.h.b16 %v98
    %v163 = vunpack.c.l.b16 %v99
    %v164 = vunpack.c.h.b16 %v99
    %v165 = vunpack.c.l.b16 %v100
    %v166 = vunpack.c.h.b16 %v100
    %v167 = vpack.c.b16 %v155, %v151
    %v168 = vpack.c.b16 %v156, %v152
    %v169 = vpack.c.b16 %v157, %v153
    %v170 = vpack.c.b16 %v158, %v154
    %v171 = vpack.c.b16 %v163, %v159
    %v172 = vpack.c.b16 %v164, %v160
    %v173 = vpack.c.b16 %v165, %v161
    %v174 = vpack.c.b16 %v166, %v162
    %vm183 = vcmask 261120
    %v185 = vsel %vm183, %v139, 0
    %v188 = vsel %vm183, %v140, 0
    %v191 = vsel %vm183, %v141, 0
    %v194 = vsel %vm183, %v142, 0
    %196 = vmatprep.subr.bf16.mxu0 %v168
    %197 = vmatpush1.bf16.msra.mxu0 %v167
    %198 = vmatprep.subr.bf16.mxu0 %v172
    %199 = vmatpush1.bf16.msra.mxu0 %v171
    %200 = vmatprep.subr.bf16.mxu0 0
    %201 = vmatpush1.bf16.msra.mxu0 0
    %202 = vmatprep.subr.bf16.mxu0 0
    %203 = vmatpush1.bf16.msra.mxu0 0
    %204 = vmatprep.subr.bf16.mxu0 0
    %205 = vmatpush1.bf16.msra.mxu0 0
    %206 = vmatprep.subr.bf16.mxu0 0
    %207 = vmatpush1.bf16.msra.mxu0 0
    %208 = vmatprep.subr.bf16.mxu0 0
    %209 = vmatpush1.bf16.msra.mxu0 0
    %210 = vmatprep.subr.bf16.mxu0 0
    %211 = vmatpush1.bf16.msra.mxu0 0
    %212 = vmatprep.subr.bf16.mxu0 0
    %213 = vmatpush1.bf16.msra.mxu0 0
    %214 = vmatprep.subr.bf16.mxu0 0
    %215 = vmatpush1.bf16.msra.mxu0 0
    %216 = vmatprep.subr.bf16.mxu0 0
    %217 = vmatpush1.bf16.msra.mxu0 0
    %218 = vmatprep.subr.bf16.mxu0 0
    %219 = vmatpush1.bf16.msra.mxu0 0
    %220 = vmatprep.subr.bf16.mxu0 0
    %221 = vmatpush1.bf16.msra.mxu0 0
    %222 = vmatprep.subr.bf16.mxu0 0
    %223 = vmatpush1.bf16.msra.mxu0 0
    %224 = vmatprep.subr.bf16.mxu0 0
    %225 = vmatpush1.bf16.msra.mxu0 0
    %226 = vmatprep.subr.bf16.mxu0 0
    %227 = vmatpush1.bf16.msra.mxu0 0
    %228 = vmatprep.mubr.bf16.mxu0 0
    %229 = vmatmul.mubr.bf16.gmra.mrb[0].mxu0 %v185
    %v230 = vpop.f32.mrb[0].mxu0
    %v231 = vadd.f32 %v106, %v230
    %v232 = vpop.f32.mrb[0].mxu0
    %v233 = vadd.f32 %v110, %v232
    %v234 = vpop.f32.mrb[0].mxu0
    %v235 = vadd.f32 %v106, %v234
    %v236 = vpop.f32.mrb[0].mxu0
    %v237 = vadd.f32 %v110, %v236
    %238 = vmatprep.mubr.bf16.mxu0 0
    %239 = vmatmul.mubr.bf16.gmra.mrb[0].mxu0 %v188
    %v240 = vpop.f32.mrb[0].mxu0
    %v241 = vadd.f32 %v106, %v240
    %v242 = vpop.f32.mrb[0].mxu0
    %v243 = vadd.f32 %v110, %v242
    %v244 = vpop.f32.mrb[0].mxu0
    %v245 = vadd.f32 %v106, %v244
    %v246 = vpop.f32.mrb[0].mxu0
    %v247 = vadd.f32 %v110, %v246
    %248 = vmatprep.mubr.bf16.mxu0 0
    %249 = vmatmul.mubr.bf16.gmra.mrb[0].mxu0 %v191
    %v250 = vpop.f32.mrb[0].mxu0
    %v251 = vadd.f32 %v106, %v250
    %v252 = vpop.f32.mrb[0].mxu0
    %v253 = vadd.f32 %v110, %v252
    %v254 = vpop.f32.mrb[0].mxu0
    %v255 = vadd.f32 %v106, %v254
    %v256 = vpop.f32.mrb[0].mxu0
    %v257 = vadd.f32 %v110, %v256
    %258 = vmatprep.mubr.bf16.mxu0 0
    %259 = vmatmul.mubr.bf16.gmra.mrb[0].mxu0 %v194
    %v260 = vpop.f32.mrb[0].mxu0
    %v261 = vadd.f32 %v106, %v260
    %v262 = vpop.f32.mrb[0].mxu0
    %v263 = vadd.f32 %v110, %v262
    %v264 = vpop.f32.mrb[0].mxu0
    %v265 = vadd.f32 %v106, %v264
    %v266 = vpop.f32.mrb[0].mxu0
    %v267 = vadd.f32 %v110, %v266
    %268 = vdwg.mxu0
    %269 = vmatprep.subr.bf16.mxu0 %v170
    %270 = vmatpush1.bf16.msra.mxu0 %v169
    %271 = vmatprep.subr.bf16.mxu0 %v174
    %272 = vmatpush1.bf16.msra.mxu0 %v173
    %273 = vmatprep.subr.bf16.mxu0 0
    %274 = vmatpush1.bf16.msra.mxu0 0
    %275 = vmatprep.subr.bf16.mxu0 0
    %276 = vmatpush1.bf16.msra.mxu0 0
    %277 = vmatprep.subr.bf16.mxu0 0
    %278 = vmatpush1.bf16.msra.mxu0 0
    %279 = vmatprep.subr.bf16.mxu0 0
    %280 = vmatpush1.bf16.msra.mxu0 0
    %281 = vmatprep.subr.bf16.mxu0 0
    %282 = vmatpush1.bf16.msra.mxu0 0
    %283 = vmatprep.subr.bf16.mxu0 0
    %284 = vmatpush1.bf16.msra.mxu0 0
    %285 = vmatprep.subr.bf16.mxu0 0
    %286 = vmatpush1.bf16.msra.mxu0 0
    %287 = vmatprep.subr.bf16.mxu0 0
    %288 = vmatpush1.bf16.msra.mxu0 0
    %289 = vmatprep.subr.bf16.mxu0 0
    %290 = vmatpush1.bf16.msra.mxu0 0
    %291 = vmatprep.subr.bf16.mxu0 0
    %292 = vmatpush1.bf16.msra.mxu0 0
    %293 = vmatprep.subr.bf16.mxu0 0
    %294 = vmatpush1.bf16.msra.mxu0 0
    %295 = vmatprep.subr.bf16.mxu0 0
    %296 = vmatpush1.bf16.msra.mxu0 0
    %297 = vmatprep.subr.bf16.mxu0 0
    %298 = vmatpush1.bf16.msra.mxu0 0
    %299 = vmatprep.subr.bf16.mxu0 0
    %300 = vmatpush1.bf16.msra.mxu0 0
    %301 = vmatprep.mubr.bf16.mxu0 0
    %302 = vmatmul.mubr.bf16.gmra.mrb[0].mxu0 %v185
    %v303 = vpop.f32.mrb[0].mxu0
    %v304 = vadd.f32 %v114, %v303
    %v305 = vpop.f32.mrb[0].mxu0
    %v306 = vadd.f32 %v118, %v305
    %v307 = vpop.f32.mrb[0].mxu0
    %v308 = vadd.f32 %v114, %v307
    %v309 = vpop.f32.mrb[0].mxu0
    %v310 = vadd.f32 %v118, %v309
    %311 = vmatprep.mubr.bf16.mxu0 0
    %312 = vmatmul.mubr.bf16.gmra.mrb[0].mxu0 %v188
    %v313 = vpop.f32.mrb[0].mxu0
    %v314 = vadd.f32 %v114, %v313
    %v315 = vpop.f32.mrb[0].mxu0
    %v316 = vadd.f32 %v118, %v315
    %v317 = vpop.f32.mrb[0].mxu0
    %v318 = vadd.f32 %v114, %v317
    %v319 = vpop.f32.mrb[0].mxu0
    %v320 = vadd.f32 %v118, %v319
    %321 = vmatprep.mubr.bf16.mxu0 0
    %322 = vmatmul.mubr.bf16.gmra.mrb[0].mxu0 %v191
    %v323 = vpop.f32.mrb[0].mxu0
    %v324 = vadd.f32 %v114, %v323
    %v325 = vpop.f32.mrb[0].mxu0
    %v326 = vadd.f32 %v118, %v325
    %v327 = vpop.f32.mrb[0].mxu0
    %v328 = vadd.f32 %v114, %v327
    %v329 = vpop.f32.mrb[0].mxu0
    %v330 = vadd.f32 %v118, %v329
    %331 = vmatprep.mubr.bf16.mxu0 0
    %332 = vmatmul.mubr.bf16.gmra.mrb[0].mxu0 %v194
    %v333 = vpop.f32.mrb[0].mxu0
    %v334 = vadd.f32 %v114, %v333
    %v335 = vpop.f32.mrb[0].mxu0
    %v336 = vadd.f32 %v118, %v335
    %v337 = vpop.f32.mrb[0].mxu0
    %v338 = vadd.f32 %v114, %v337
    %v339 = vpop.f32.mrb[0].mxu0
    %v340 = vadd.f32 %v118, %v339
    %341 = vdwg.mxu0
    %v342 = vmax.f32 %v231, 0.0
    %v343 = vmax.f32 %v233, 0.0
    %v344 = vmax.f32 %v304, 0.0
    %v345 = vmax.f32 %v306, 0.0
    %v346 = vmax.f32 %v235, 0.0
    %v347 = vmax.f32 %v237, 0.0
    %v348 = vmax.f32 %v308, 0.0
    %v349 = vmax.f32 %v310, 0.0
    %v350 = vmax.f32 %v241, 0.0
    %v351 = vmax.f32 %v243, 0.0
    %v352 = vmax.f32 %v314, 0.0
    %v353 = vmax.f32 %v316, 0.0
    %v354 = vmax.f32 %v245, 0.0
    %v355 = vmax.f32 %v247, 0.0
    %v356 = vmax.f32 %v318, 0.0
    %v357 = vmax.f32 %v320, 0.0
    %v358 = vmax.f32 %v251, 0.0
    %v359 = vmax.f32 %v253, 0.0
    %v360 = vmax.f32 %v324, 0.0
    %v361 = vmax.f32 %v326, 0.0
    %v362 = vmax.f32 %v255, 0.0
    %v363 = vmax.f32 %v257, 0.0
    %v364 = vmax.f32 %v328, 0.0
    %v365 = vmax.f32 %v330, 0.0
    %v366 = vmax.f32 %v261, 0.0
    %v367 = vmax.f32 %v263, 0.0
    %v368 = vmax.f32 %v334, 0.0
    %v369 = vmax.f32 %v336, 0.0
    %v370 = vmax.f32 %v265, 0.0
    %v371 = vmax.f32 %v267, 0.0
    %v372 = vmax.f32 %v338, 0.0
    %v373 = vmax.f32 %v340, 0.0
    %v374 = vadd.f32 %v342, 1.0
    %v375 = vlog2.pop %v374
    %v376 = vmul.f32 %v375, 0.6931472
    %v377 = vmul.f32 -0.5, %v342
    %v378 = vadd.f32 %v377, 1.0
    %v379 = vmul.f32 %v378, %v342
    %v380 = vand.u32 2147483647, %v342
    %vm381 = vcmp.lt.f32.partialorder %v380, 0.0004427343
    %v382 = vsel %vm381, %v379, %v376
    %v383 = vadd.f32 %v343, 1.0
    %v384 = vlog2.pop %v383
    %v385 = vmul.f32 %v384, 0.6931472
    %v386 = vmul.f32 -0.5, %v343
    %v387 = vadd.f32 %v386, 1.0
    %v388 = vmul.f32 %v387, %v343
    %v389 = vand.u32 2147483647, %v343
    %vm390 = vcmp.lt.f32.partialorder %v389, 0.0004427343
    %v391 = vsel %vm390, %v388, %v385
    %v392 = vadd.f32 %v344, 1.0
    %v393 = vlog2.pop %v392
    %v394 = vmul.f32 %v393, 0.6931472
    %v395 = vmul.f32 -0.5, %v344
    %v396 = vadd.f32 %v395, 1.0
    %v397 = vmul.f32 %v396, %v344
    %v398 = vand.u32 2147483647, %v344
    %vm399 = vcmp.lt.f32.partialorder %v398, 0.0004427343
    %v400 = vsel %vm399, %v397, %v394
    %v401 = vadd.f32 %v345, 1.0
    %v402 = vlog2.pop %v401
    %v403 = vmul.f32 %v402, 0.6931472
    %v404 = vmul.f32 -0.5, %v345
    %v405 = vadd.f32 %v404, 1.0
    %v406 = vmul.f32 %v405, %v345
    %v407 = vand.u32 2147483647, %v345
    %vm408 = vcmp.lt.f32.partialorder %v407, 0.0004427343
    %v409 = vsel %vm408, %v406, %v403
    %v410 = vadd.f32 %v346, 1.0
    %v411 = vlog2.pop %v410
    %v412 = vmul.f32 %v411, 0.6931472
    %v413 = vmul.f32 -0.5, %v346
    %v414 = vadd.f32 %v413, 1.0
    %v415 = vmul.f32 %v414, %v346
    %v416 = vand.u32 2147483647, %v346
    %vm417 = vcmp.lt.f32.partialorder %v416, 0.0004427343
    %v418 = vsel %vm417, %v415, %v412
    %v419 = vadd.f32 %v347, 1.0
    %v420 = vlog2.pop %v419
    %v421 = vmul.f32 %v420, 0.6931472
    %v422 = vmul.f32 -0.5, %v347
    %v423 = vadd.f32 %v422, 1.0
    %v424 = vmul.f32 %v423, %v347
    %v425 = vand.u32 2147483647, %v347
    %vm426 = vcmp.lt.f32.partialorder %v425, 0.0004427343
    %v427 = vsel %vm426, %v424, %v421
    %v428 = vadd.f32 %v348, 1.0
    %v429 = vlog2.pop %v428
    %v430 = vmul.f32 %v429, 0.6931472
    %v431 = vmul.f32 -0.5, %v348
    %v432 = vadd.f32 %v431, 1.0
    %v433 = vmul.f32 %v432, %v348
    %v434 = vand.u32 2147483647, %v348
    %vm435 = vcmp.lt.f32.partialorder %v434, 0.0004427343
    %v436 = vsel %vm435, %v433, %v430
    %v437 = vadd.f32 %v349, 1.0
    %v438 = vlog2.pop %v437
    %v439 = vmul.f32 %v438, 0.6931472
    %v440 = vmul.f32 -0.5, %v349
    %v441 = vadd.f32 %v440, 1.0
    %v442 = vmul.f32 %v441, %v349
    %v443 = vand.u32 2147483647, %v349
    %vm444 = vcmp.lt.f32.partialorder %v443, 0.0004427343
    %v445 = vsel %vm444, %v442, %v439
    %v446 = vadd.f32 %v350, 1.0
    %v447 = vlog2.pop %v446
    %v448 = vmul.f32 %v447, 0.6931472
    %v449 = vmul.f32 -0.5, %v350
    %v450 = vadd.f32 %v449, 1.0
    %v451 = vmul.f32 %v450, %v350
    %v452 = vand.u32 2147483647, %v350
    %vm453 = vcmp.lt.f32.partialorder %v452, 0.0004427343
    %v454 = vsel %vm453, %v451, %v448
    %v455 = vadd.f32 %v351, 1.0
    %v456 = vlog2.pop %v455
    %v457 = vmul.f32 %v456, 0.6931472
    %v458 = vmul.f32 -0.5, %v351
    %v459 = vadd.f32 %v458, 1.0
    %v460 = vmul.f32 %v459, %v351
    %v461 = vand.u32 2147483647, %v351
    %vm462 = vcmp.lt.f32.partialorder %v461, 0.0004427343
    %v463 = vsel %vm462, %v460, %v457
    %v464 = vadd.f32 %v352, 1.0
    %v465 = vlog2.pop %v464
    %v466 = vmul.f32 %v465, 0.6931472
    %v467 = vmul.f32 -0.5, %v352
    %v468 = vadd.f32 %v467, 1.0
    %v469 = vmul.f32 %v468, %v352
    %v470 = vand.u32 2147483647, %v352
    %vm471 = vcmp.lt.f32.partialorder %v470, 0.0004427343
    %v472 = vsel %vm471, %v469, %v466
    %v473 = vadd.f32 %v353, 1.0
    %v474 = vlog2.pop %v473
    %v475 = vmul.f32 %v474, 0.6931472
    %v476 = vmul.f32 -0.5, %v353
    %v477 = vadd.f32 %v476, 1.0
    %v478 = vmul.f32 %v477, %v353
    %v479 = vand.u32 2147483647, %v353
    %vm480 = vcmp.lt.f32.partialorder %v479, 0.0004427343
    %v481 = vsel %vm480, %v478, %v475
    %v482 = vadd.f32 %v354, 1.0
    %v483 = vlog2.pop %v482
    %v484 = vmul.f32 %v483, 0.6931472
    %v485 = vmul.f32 -0.5, %v354
    %v486 = vadd.f32 %v485, 1.0
    %v487 = vmul.f32 %v486, %v354
    %v488 = vand.u32 2147483647, %v354
    %vm489 = vcmp.lt.f32.partialorder %v488, 0.0004427343
    %v490 = vsel %vm489, %v487, %v484
    %v491 = vadd.f32 %v355, 1.0
    %v492 = vlog2.pop %v491
    %v493 = vmul.f32 %v492, 0.6931472
    %v494 = vmul.f32 -0.5, %v355
    %v495 = vadd.f32 %v494, 1.0
    %v496 = vmul.f32 %v495, %v355
    %v497 = vand.u32 2147483647, %v355
    %vm498 = vcmp.lt.f32.partialorder %v497, 0.0004427343
    %v499 = vsel %vm498, %v496, %v493
    %v500 = vadd.f32 %v356, 1.0
    %v501 = vlog2.pop %v500
    %v502 = vmul.f32 %v501, 0.6931472
    %v503 = vmul.f32 -0.5, %v356
    %v504 = vadd.f32 %v503, 1.0
    %v505 = vmul.f32 %v504, %v356
    %v506 = vand.u32 2147483647, %v356
    %vm507 = vcmp.lt.f32.partialorder %v506, 0.0004427343
    %v508 = vsel %vm507, %v505, %v502
    %v509 = vadd.f32 %v357, 1.0
    %v510 = vlog2.pop %v509
    %v511 = vmul.f32 %v510, 0.6931472
    %v512 = vmul.f32 -0.5, %v357
    %v513 = vadd.f32 %v512, 1.0
    %v514 = vmul.f32 %v513, %v357
    %v515 = vand.u32 2147483647, %v357
    %vm516 = vcmp.lt.f32.partialorder %v515, 0.0004427343
    %v517 = vsel %vm516, %v514, %v511
    %v518 = vadd.f32 %v358, 1.0
    %v519 = vlog2.pop %v518
    %v520 = vmul.f32 %v519, 0.6931472
    %v521 = vmul.f32 -0.5, %v358
    %v522 = vadd.f32 %v521, 1.0
    %v523 = vmul.f32 %v522, %v358
    %v524 = vand.u32 2147483647, %v358
    %vm525 = vcmp.lt.f32.partialorder %v524, 0.0004427343
    %v526 = vsel %vm525, %v523, %v520
    %v527 = vadd.f32 %v359, 1.0
    %v528 = vlog2.pop %v527
    %v529 = vmul.f32 %v528, 0.6931472
    %v530 = vmul.f32 -0.5, %v359
    %v531 = vadd.f32 %v530, 1.0
    %v532 = vmul.f32 %v531, %v359
    %v533 = vand.u32 2147483647, %v359
    %vm534 = vcmp.lt.f32.partialorder %v533, 0.0004427343
    %v535 = vsel %vm534, %v532, %v529
    %v536 = vadd.f32 %v360, 1.0
    %v537 = vlog2.pop %v536
    %v538 = vmul.f32 %v537, 0.6931472
    %v539 = vmul.f32 -0.5, %v360
    %v540 = vadd.f32 %v539, 1.0
    %v541 = vmul.f32 %v540, %v360
    %v542 = vand.u32 2147483647, %v360
    %vm543 = vcmp.lt.f32.partialorder %v542, 0.0004427343
    %v544 = vsel %vm543, %v541, %v538
    %v545 = vadd.f32 %v361, 1.0
    %v546 = vlog2.pop %v545
    %v547 = vmul.f32 %v546, 0.6931472
    %v548 = vmul.f32 -0.5, %v361
    %v549 = vadd.f32 %v548, 1.0
    %v550 = vmul.f32 %v549, %v361
    %v551 = vand.u32 2147483647, %v361
    %vm552 = vcmp.lt.f32.partialorder %v551, 0.0004427343
    %v553 = vsel %vm552, %v550, %v547
    %v554 = vadd.f32 %v362, 1.0
    %v555 = vlog2.pop %v554
    %v556 = vmul.f32 %v555, 0.6931472
    %v557 = vmul.f32 -0.5, %v362
    %v558 = vadd.f32 %v557, 1.0
    %v559 = vmul.f32 %v558, %v362
    %v560 = vand.u32 2147483647, %v362
    %vm561 = vcmp.lt.f32.partialorder %v560, 0.0004427343
    %v562 = vsel %vm561, %v559, %v556
    %v563 = vadd.f32 %v363, 1.0
    %v564 = vlog2.pop %v563
    %v565 = vmul.f32 %v564, 0.6931472
    %v566 = vmul.f32 -0.5, %v363
    %v567 = vadd.f32 %v566, 1.0
    %v568 = vmul.f32 %v567, %v363
    %v569 = vand.u32 2147483647, %v363
    %vm570 = vcmp.lt.f32.partialorder %v569, 0.0004427343
    %v571 = vsel %vm570, %v568, %v565
    %v572 = vadd.f32 %v364, 1.0
    %v573 = vlog2.pop %v572
    %v574 = vmul.f32 %v573, 0.6931472
    %v575 = vmul.f32 -0.5, %v364
    %v576 = vadd.f32 %v575, 1.0
    %v577 = vmul.f32 %v576, %v364
    %v578 = vand.u32 2147483647, %v364
    %vm579 = vcmp.lt.f32.partialorder %v578, 0.0004427343
    %v580 = vsel %vm579, %v577, %v574
    %v581 = vadd.f32 %v365, 1.0
    %v582 = vlog2.pop %v581
    %v583 = vmul.f32 %v582, 0.6931472
    %v584 = vmul.f32 -0.5, %v365
    %v585 = vadd.f32 %v584, 1.0
    %v586 = vmul.f32 %v585, %v365
    %v587 = vand.u32 2147483647, %v365
    %vm588 = vcmp.lt.f32.partialorder %v587, 0.0004427343
    %v589 = vsel %vm588, %v586, %v583
    %v590 = vadd.f32 %v366, 1.0
    %v591 = vlog2.pop %v590
    %v592 = vmul.f32 %v591, 0.6931472
    %v593 = vmul.f32 -0.5, %v366
    %v594 = vadd.f32 %v593, 1.0
    %v595 = vmul.f32 %v594, %v366
    %v596 = vand.u32 2147483647, %v366
    %vm597 = vcmp.lt.f32.partialorder %v596, 0.0004427343
    %v598 = vsel %vm597, %v595, %v592
    %v599 = vadd.f32 %v367, 1.0
    %v600 = vlog2.pop %v599
    %v601 = vmul.f32 %v600, 0.6931472
    %v602 = vmul.f32 -0.5, %v367
    %v603 = vadd.f32 %v602, 1.0
    %v604 = vmul.f32 %v603, %v367
    %v605 = vand.u32 2147483647, %v367
    %vm606 = vcmp.lt.f32.partialorder %v605, 0.0004427343
    %v607 = vsel %vm606, %v604, %v601
    %v608 = vadd.f32 %v368, 1.0
    %v609 = vlog2.pop %v608
    %v610 = vmul.f32 %v609, 0.6931472
    %v611 = vmul.f32 -0.5, %v368
    %v612 = vadd.f32 %v611, 1.0
    %v613 = vmul.f32 %v612, %v368
    %v614 = vand.u32 2147483647, %v368
    %vm615 = vcmp.lt.f32.partialorder %v614, 0.0004427343
    %v616 = vsel %vm615, %v613, %v610
    %v617 = vadd.f32 %v369, 1.0
    %v618 = vlog2.pop %v617
    %v619 = vmul.f32 %v618, 0.6931472
    %v620 = vmul.f32 -0.5, %v369
    %v621 = vadd.f32 %v620, 1.0
    %v622 = vmul.f32 %v621, %v369
    %v623 = vand.u32 2147483647, %v369
    %vm624 = vcmp.lt.f32.partialorder %v623, 0.0004427343
    %v625 = vsel %vm624, %v622, %v619
    %v626 = vadd.f32 %v370, 1.0
    %v627 = vlog2.pop %v626
    %v628 = vmul.f32 %v627, 0.6931472
    %v629 = vmul.f32 -0.5, %v370
    %v630 = vadd.f32 %v629, 1.0
    %v631 = vmul.f32 %v630, %v370
    %v632 = vand.u32 2147483647, %v370
    %vm633 = vcmp.lt.f32.partialorder %v632, 0.0004427343
    %v634 = vsel %vm633, %v631, %v628
    %v635 = vadd.f32 %v371, 1.0
    %v636 = vlog2.pop %v635
    %v637 = vmul.f32 %v636, 0.6931472
    %v638 = vmul.f32 -0.5, %v371
    %v639 = vadd.f32 %v638, 1.0
    %v640 = vmul.f32 %v639, %v371
    %v641 = vand.u32 2147483647, %v371
    %vm642 = vcmp.lt.f32.partialorder %v641, 0.0004427343
    %v643 = vsel %vm642, %v640, %v637
    %v644 = vadd.f32 %v372, 1.0
    %v645 = vlog2.pop %v644
    %v646 = vmul.f32 %v645, 0.6931472
    %v647 = vmul.f32 -0.5, %v372
    %v648 = vadd.f32 %v647, 1.0
    %v649 = vmul.f32 %v648, %v372
    %v650 = vand.u32 2147483647, %v372
    %vm651 = vcmp.lt.f32.partialorder %v650, 0.0004427343
    %v652 = vsel %vm651, %v649, %v646
    %v653 = vadd.f32 %v373, 1.0
    %v654 = vlog2.pop %v653
    %v655 = vmul.f32 %v654, 0.6931472
    %v656 = vmul.f32 -0.5, %v373
    %v657 = vadd.f32 %v656, 1.0
    %v658 = vmul.f32 %v657, %v373
    %v659 = vand.u32 2147483647, %v373
    %vm660 = vcmp.lt.f32.partialorder %v659, 0.0004427343
    %v661 = vsel %vm660, %v658, %v655
    %v662 = vpack.c.bf16 %v418, %v382
    %v663 = vpack.c.bf16 %v427, %v391
    %v664 = vpack.c.bf16 %v436, %v400
    %v665 = vpack.c.bf16 %v445, %v409
    %v666 = vpack.c.bf16 %v490, %v454
    %v667 = vpack.c.bf16 %v499, %v463
    %v668 = vpack.c.bf16 %v508, %v472
    %v669 = vpack.c.bf16 %v517, %v481
    %v670 = vpack.c.bf16 %v562, %v526
    %v671 = vpack.c.bf16 %v571, %v535
    %v672 = vpack.c.bf16 %v580, %v544
    %v673 = vpack.c.bf16 %v589, %v553
    %v674 = vpack.c.bf16 %v634, %v598
    %v675 = vpack.c.bf16 %v643, %v607
    %v676 = vpack.c.bf16 %v652, %v616
    %v677 = vpack.c.bf16 %v661, %v625
    %v694 = vunpack.c.l.b16 %v662
    %v695 = vunpack.c.l.b16 %v663
    %v696 = vunpack.c.l.b16 %v664
    %v697 = vunpack.c.l.b16 %v665
    %v698 = vunpack.c.h.b16 %v662
    %v699 = vunpack.c.h.b16 %v663
    %v700 = vunpack.c.h.b16 %v664
    %v701 = vunpack.c.h.b16 %v665
    %v702 = vunpack.c.l.b16 %v666
    %v703 = vunpack.c.l.b16 %v667
    %v704 = vunpack.c.l.b16 %v668
    %v705 = vunpack.c.l.b16 %v669
    %v706 = vunpack.c.h.b16 %v666
    %v707 = vunpack.c.h.b16 %v667
    %v708 = vunpack.c.h.b16 %v668
    %v709 = vunpack.c.h.b16 %v669
    %v710 = vunpack.c.l.b16 %v670
    %v711 = vunpack.c.l.b16 %v671
    %v712 = vunpack.c.l.b16 %v672
    %v713 = vunpack.c.l.b16 %v673
    %v714 = vunpack.c.h.b16 %v670
    %v715 = vunpack.c.h.b16 %v671
    %v716 = vunpack.c.h.b16 %v672
    %v717 = vunpack.c.h.b16 %v673
    %v718 = vunpack.c.l.b16 %v674
    %v719 = vunpack.c.l.b16 %v675
    %v720 = vunpack.c.l.b16 %v676
    %v721 = vunpack.c.l.b16 %v677
    %v722 = vunpack.c.h.b16 %v674
    %v723 = vunpack.c.h.b16 %v675
    %v724 = vunpack.c.h.b16 %v676
    %v725 = vunpack.c.h.b16 %v677
    %v726 = vpack.c.b16 %v695, %v694
    %v727 = vpack.c.b16 %v697, %v696
    %v728 = vpack.c.b16 %v699, %v698
    %v729 = vpack.c.b16 %v701, %v700
    %v730 = vpack.c.b16 %v703, %v702
    %v731 = vpack.c.b16 %v705, %v704
    %v732 = vpack.c.b16 %v707, %v706
    %v733 = vpack.c.b16 %v709, %v708
    %v734 = vpack.c.b16 %v711, %v710
    %v735 = vpack.c.b16 %v713, %v712
    %v736 = vpack.c.b16 %v715, %v714
    %v737 = vpack.c.b16 %v717, %v716
    %v738 = vpack.c.b16 %v719, %v718
    %v739 = vpack.c.b16 %v721, %v720
    %v740 = vpack.c.b16 %v723, %v722
    %v741 = vpack.c.b16 %v725, %v724
    %758 = vst [vmem:[#allocation10] sm:$0xff] %v726
    %759 = vst [vmem:[#allocation10 + $0x8] sm:$0xff] %v727
    %760 = vst [vmem:[#allocation10 + $0x10] sm:$0xff] %v728
    %761 = vst [vmem:[#allocation10 + $0x18] sm:$0xff] %v729
    %762 = vst [vmem:[#allocation10 + $0x20] sm:$0xff] %v730
    %763 = vst [vmem:[#allocation10 + $0x28] sm:$0xff] %v731
    %764 = vst [vmem:[#allocation10 + $0x30] sm:$0xff] %v732
    %765 = vst [vmem:[#allocation10 + $0x38] sm:$0xff] %v733
    %766 = vst [vmem:[#allocation10 + $0x40] sm:$0xff] %v734
    %767 = vst [vmem:[#allocation10 + $0x48] sm:$0xff] %v735
    %768 = vst [vmem:[#allocation10 + $0x50] sm:$0xff] %v736
    %769 = vst [vmem:[#allocation10 + $0x58] sm:$0xff] %v737
    %770 = vst [vmem:[#allocation10 + $0x60] sm:$0xff] %v738
    %771 = vst [vmem:[#allocation10 + $0x68] sm:$0xff] %v739
    %772 = vst [vmem:[#allocation10 + $0x70] sm:$0xff] %v740
    %773 = vst [vmem:[#allocation10 + $0x78] sm:$0xff] %v741
    %v774 = vld [vmem:[#allocation5] sm:$0xff]
    %v775 = vld [vmem:[#allocation5 + $0x8] sm:$0xff]
    %v776 = vld [vmem:[#allocation5 + $0x10] sm:$0xff]
    %v777 = vld [vmem:[#allocation5 + $0x18] sm:$0xff]
    %v778 = vld [vmem:[#allocation5 + $0x20] sm:$0xff]
    %v779 = vld [vmem:[#allocation5 + $0x28] sm:$0xff]
    %v780 = vld [vmem:[#allocation5 + $0x30] sm:$0xff]
    %v781 = vld [vmem:[#allocation5 + $0x38] sm:$0xff]
    %783 = vset.pattern.permute.xlu0 0
    %784 = vperm.xlu0 %783, %v774
    %v785 = vpop.permute.xlu0 %784
    %788 = vset.pattern.permute.xlu0 0
    %789 = vperm.xlu0 %788, %v775
    %v790 = vpop.permute.xlu0 %789
    %793 = vset.pattern.permute.xlu0 0
    %794 = vperm.xlu0 %793, %v776
    %v795 = vpop.permute.xlu0 %794
    %798 = vset.pattern.permute.xlu0 0
    %799 = vperm.xlu0 %798, %v777
    %v800 = vpop.permute.xlu0 %799
    %803 = vset.pattern.permute.xlu0 0
    %804 = vperm.xlu0 %803, %v778
    %v805 = vpop.permute.xlu0 %804
    %808 = vset.pattern.permute.xlu0 0
    %809 = vperm.xlu0 %808, %v779
    %v810 = vpop.permute.xlu0 %809
    %813 = vset.pattern.permute.xlu0 0
    %814 = vperm.xlu0 %813, %v780
    %v815 = vpop.permute.xlu0 %814
    %818 = vset.pattern.permute.xlu0 0
    %819 = vperm.xlu0 %818, %v781
    %v820 = vpop.permute.xlu0 %819
    %v822 = vmul.f32 %v382, %v785
    %v823 = vmul.f32 %v391, %v785
    %v824 = vmul.f32 %v400, %v785
    %v825 = vmul.f32 %v409, %v785
    %v826 = vmul.f32 %v418, %v790
    %v827 = vmul.f32 %v427, %v790
    %v828 = vmul.f32 %v436, %v790
    %v829 = vmul.f32 %v445, %v790
    %v830 = vmul.f32 %v454, %v795
    %v831 = vmul.f32 %v463, %v795
    %v832 = vmul.f32 %v472, %v795
    %v833 = vmul.f32 %v481, %v795
    %v834 = vmul.f32 %v490, %v800
    %v835 = vmul.f32 %v499, %v800
    %v836 = vmul.f32 %v508, %v800
    %v837 = vmul.f32 %v517, %v800
    %v838 = vmul.f32 %v526, %v805
    %v839 = vmul.f32 %v535, %v805
    %v840 = vmul.f32 %v544, %v805
    %v841 = vmul.f32 %v553, %v805
    %v842 = vmul.f32 %v562, %v810
    %v843 = vmul.f32 %v571, %v810
    %v844 = vmul.f32 %v580, %v810
    %v845 = vmul.f32 %v589, %v810
    %v846 = vmul.f32 %v598, %v815
    %v847 = vmul.f32 %v607, %v815
    %v848 = vmul.f32 %v616, %v815
    %v849 = vmul.f32 %v625, %v815
    %v850 = vmul.f32 %v634, %v820
    %v851 = vmul.f32 %v643, %v820
    %v852 = vmul.f32 %v652, %v820
    %v853 = vmul.f32 %v661, %v820
    %v854 = vmax.f32 %v822, %v826
    %v855 = vmax.f32 %v854, %v830
    %v856 = vmax.f32 %v855, %v834
    %v857 = vrot.slane %v856, 4
    %v858 = vmax.f32 %v856, %v857
    %v859 = vrot.slane %v858, 2
    %v860 = vmax.f32 %v858, %v859
    %v861 = vrot.slane %v860, 1
    %v862 = vmax.f32 %v860, %v861
    %v863 = vmax.f32 %v823, %v827
    %v864 = vmax.f32 %v863, %v831
    %v865 = vmax.f32 %v864, %v835
    %v866 = vrot.slane %v865, 4
    %v867 = vmax.f32 %v865, %v866
    %v868 = vrot.slane %v867, 2
    %v869 = vmax.f32 %v867, %v868
    %v870 = vrot.slane %v869, 1
    %v871 = vmax.f32 %v869, %v870
    %v872 = vmax.f32 %v824, %v828
    %v873 = vmax.f32 %v872, %v832
    %v874 = vmax.f32 %v873, %v836
    %v875 = vrot.slane %v874, 4
    %v876 = vmax.f32 %v874, %v875
    %v877 = vrot.slane %v876, 2
    %v878 = vmax.f32 %v876, %v877
    %v879 = vrot.slane %v878, 1
    %v880 = vmax.f32 %v878, %v879
    %v881 = vmax.f32 %v825, %v829
    %v882 = vmax.f32 %v881, %v833
    %v883 = vmax.f32 %v882, %v837
    %v884 = vrot.slane %v883, 4
    %v885 = vmax.f32 %v883, %v884
    %v886 = vrot.slane %v885, 2
    %v887 = vmax.f32 %v885, %v886
    %v888 = vrot.slane %v887, 1
    %v889 = vmax.f32 %v887, %v888
    %v890 = vmax.f32 %v838, %v842
    %v891 = vmax.f32 %v890, %v846
    %v892 = vmax.f32 %v891, %v850
    %v893 = vrot.slane %v892, 4
    %v894 = vmax.f32 %v892, %v893
    %v895 = vrot.slane %v894, 2
    %v896 = vmax.f32 %v894, %v895
    %v897 = vrot.slane %v896, 1
    %v898 = vmax.f32 %v896, %v897
    %v899 = vmax.f32 %v839, %v843
    %v900 = vmax.f32 %v899, %v847
    %v901 = vmax.f32 %v900, %v851
    %v902 = vrot.slane %v901, 4
    %v903 = vmax.f32 %v901, %v902
    %v904 = vrot.slane %v903, 2
    %v905 = vmax.f32 %v903, %v904
    %v906 = vrot.slane %v905, 1
    %v907 = vmax.f32 %v905, %v906
    %v908 = vmax.f32 %v840, %v844
    %v909 = vmax.f32 %v908, %v848
    %v910 = vmax.f32 %v909, %v852
    %v911 = vrot.slane %v910, 4
    %v912 = vmax.f32 %v910, %v911
    %v913 = vrot.slane %v912, 2
    %v914 = vmax.f32 %v912, %v913
    %v915 = vrot.slane %v914, 1
    %v916 = vmax.f32 %v914, %v915
    %v917 = vmax.f32 %v841, %v845
    %v918 = vmax.f32 %v917, %v849
    %v919 = vmax.f32 %v918, %v853
    %v920 = vrot.slane %v919, 4
    %v921 = vmax.f32 %v919, %v920
    %v922 = vrot.slane %v921, 2
    %v923 = vmax.f32 %v921, %v922
    %v924 = vrot.slane %v923, 1
    %v925 = vmax.f32 %v923, %v924
    %v926 = vld [vmem:[#allocation11] sm:$0xf]
    %v927 = vld [vmem:[#allocation11 + $0x4] sm:$0xf]
    %v936 = vcombine.low %v862, %v871
    %v937 = vcombine.low %v880, %v889
    %v939 = vunpack.c.l.s4 1966171168
    %v940 = vunpack.c.0.s8 %v939
    %v941 = vlaneseq
    %v942 = vshrl.u32 %v941, 7
    %v943 = vsub.s32 %v940, %v942
    %v944 = vrot.slane %v936, %v943
    %v946 = vunpack.c.l.s4 1966171168
    %v947 = vunpack.c.0.s8 %v946
    %v948 = vlaneseq
    %v949 = vshrl.u32 %v948, 7
    %v950 = vsub.s32 %v947, %v949
    %v951 = vrot.slane %v937, %v950
    %v952 = vcombine.low %v944, %v951
    %v954 = vunpack.c.l.s4 1966171168
    %v955 = vunpack.c.0.s8 %v954
    %v956 = vlaneseq
    %v957 = vshrl.u32 %v956, 7
    %v958 = vsub.s32 %v955, %v957
    %v959 = vrot.slane %v952, %v958
    %v960 = vcombine.low %v898, %v907
    %v961 = vcombine.low %v916, %v925
    %v963 = vunpack.c.l.s4 1966171168
    %v964 = vunpack.c.0.s8 %v963
    %v965 = vlaneseq
    %v966 = vshrl.u32 %v965, 7
    %v967 = vsub.s32 %v964, %v966
    %v968 = vrot.slane %v960, %v967
    %v970 = vunpack.c.l.s4 1966171168
    %v971 = vunpack.c.0.s8 %v970
    %v972 = vlaneseq
    %v973 = vshrl.u32 %v972, 7
    %v974 = vsub.s32 %v971, %v973
    %v975 = vrot.slane %v961, %v974
    %v976 = vcombine.low %v968, %v975
    %v978 = vunpack.c.l.s4 1966171168
    %v979 = vunpack.c.0.s8 %v978
    %v980 = vlaneseq
    %v981 = vshrl.u32 %v980, 7
    %v982 = vsub.s32 %v979, %v981
    %v983 = vrot.slane %v976, %v982
    %v986 = vmax.f32 %v926, %v959
    %v987 = vmax.f32 %v927, %v983
    %v988 = vlaneseq
    %vm989 = vcmp.ge.s32.totalorder %v988, 0
    %vm990 = vcmp.lt.s32.totalorder %v988, 512
    %vm991 = vmand %vm989, %vm990
    %992 = vst.msk [vmem:[#allocation11] sm:$0xf] %vm991, %v986
    %993 = vst.msk [vmem:[#allocation11 + $0x4] sm:$0xf] %vm991, %v987
    // Predicated region
    $region38: #{tpu_custom_call.1} parent=1 // pred_check
      %p994 = pneg %p75
    $region39: #{tpu_custom_call.1} parent=1 // pred_check_branch
      %996 = sbr.rel (%p994) target = $region41
    $region40: #{tpu_custom_call.1} parent=1 // pred_region
      %v997 = vld [vmem:[#allocation11] sm:$0xf]
      %v998 = vld [vmem:[#allocation11 + $0x4] sm:$0xf]
      %vm999 = vcmp.gt.f32.partialorder %v997, 0.3
      %vm1000 = vcmp.gt.f32.partialorder %v998, 0.3
      %v1001 = vsel %vm999, 1, 0
      %v1002 = vsel %vm1000, 1, 0
      %v1003 = vcvt.s32.f32 %v1001
      %v1004 = vcvt.s32.f32 %v1002
      %v1005 = vmul.f32 %v997, %v1003
      %v1006 = vmul.f32 %v998, %v1004
      %1007 = vst.msk [vmem:[#allocation11] sm:$0xf] %vm991, %v1005
      %1008 = vst.msk [vmem:[#allocation11 + $0x4] sm:$0xf] %vm991, %v1006
    $region41: #{tpu_custom_call.1} parent=1 // pred_fallthru
      _
    // Predicated region
    $region42: #{tpu_custom_call.1} parent=1 // pred_check
      _
    $region43: #{tpu_custom_call.1} parent=1 // pred_check_branch
      %1010 = sbr.rel (0) target = $region45
    $region44: #{tpu_custom_call.1} parent=1 // pred_region
      %s1012 = ssub.s32 2048, 2048
      %1013 = vsyncadd [#allocation4], %s1012
      %s1014 = sshll.u32 [#allocation10], 4
      %s1015 = int_to_ptr.vmem [resolvable:$true] %s1014
      %1020 = dma.vmem_to_hbm [thread:$0]  %s1015, 2048, %s4, [#allocation4], 256, 256, 16
    $region45: #{tpu_custom_call.1} parent=1 // pred_fallthru
      _
    // Predicated region
    $region46: #{tpu_custom_call.1} parent=1 // pred_check
      _
    $region47: #{tpu_custom_call.1} parent=1 // pred_check_branch
      %1022 = sbr.rel (0) target = $region49
    $region48: #{tpu_custom_call.1} parent=1 // pred_region
      %s1024 = ssub.s32 128, 128
      %1025 = vsyncadd [#allocation12], %s1024
      %s1026 = sshll.u32 [#allocation11], 4
      %s1027 = int_to_ptr.vmem [resolvable:$true] %s1026
      %1032 = dma.vmem_to_hbm [thread:$0]  %s1027, 128, %s5, [#allocation12], 64, 64, 4
    $region49: #{tpu_custom_call.1} parent=1 // pred_fallthru
      _
    // Predicated region
    $region50: #{tpu_custom_call.1} parent=1 // pred_check
      _
    $region51: #{tpu_custom_call.1} parent=1 // pred_check_branch
      %1034 = sbr.rel (0) target = $region53
    $region52: #{tpu_custom_call.1} parent=1 // pred_region
      %1035 = dma.done [#allocation4], 2048
    $region53: #{tpu_custom_call.1} parent=1 // pred_fallthru
      _
    // Predicated region
    $region54: #{tpu_custom_call.1} parent=1 // pred_check
      _
    $region55: #{tpu_custom_call.1} parent=1 // pred_check_branch
      %1037 = sbr.rel (0) target = $region57
    $region56: #{tpu_custom_call.1} parent=1 // pred_region
      %1038 = dma.done [#allocation12], 128
    $region57: #{tpu_custom_call.1} parent=1 // pred_fallthru
      _
    %1039 = vsyncpa [#allocation3], 1
    %1040 = vsyncpa [#allocation6], 1
    %1041 = vsyncpa [#allocation9], 1
    %1042 = vsyncpa [#allocation4], 1
    %1043 = vsyncpa [#allocation12], 1

</llo_original>
